<compile_context>
chip_gen: v7x
topology: tpu7x:2x2x1
jax: 0.10.0
libtpu: 0.0.40
codegen_flags: <defaults>
</compile_context>

<pallas_src>
import jax
import jax.numpy as jnp
from jax.experimental import pallas as pl
from jax.experimental.pallas import tpu as pltpu

_VMEM_BUFFER_BUDGET = 24 * 1024 * 1024   # target bytes for double-buffered blocks
_VMEM_LIMIT_BYTES = 32 * 1024 * 1024     # scoped VMEM: default on v6e/v7x, raised on v5e
_MAX_TM = 32768                          # absolute cap on the lane (M) tile


def _round_up(x, n):
    return ((x + n - 1) // n) * n


def _focus_conv_kernel(x_ref, w_ref, b_ref, o_ref):
    # x_ref: (1, K, tM)   w_ref: (N, K)   b_ref: (N, 1)   o_ref: (1, N, tM)
    acc = jnp.dot(w_ref[...], x_ref[0], preferred_element_type=jnp.float32)
    acc = acc + b_ref[...].astype(jnp.float32)                   # lane-broadcast bias
    o_ref[0] = (acc * jax.nn.sigmoid(acc)).astype(o_ref.dtype)   # SiLU epilogue (f32)


def space_to_channels(x):
    """Exact replica of Focus.forward's slice+cat (NCHW): cat([TL, BL, TR, BR], dim=1)."""
    tl = x[..., ::2, ::2]
    tr = x[..., ::2, 1::2]
    bl = x[..., 1::2, ::2]
    br = x[..., 1::2, 1::2]
    return jnp.concatenate([tl, bl, tr, br], axis=1)             # (B, 4C, H/2, W/2)


def _pick_tile_m(m, cin4, cout, itemsize, batch, tm_override):
    """Largest lane tile whose double-buffered working set fits the VMEM budget."""
    if tm_override is not None:
        tm = min(tm_override, _round_up(m, 128))
        return max(128, _round_up(tm, 128))
    per_col = 2 * (cin4 + cout) * itemsize          # dbl-buffered bytes per M column
    cap = (_VMEM_BUFFER_BUDGET // per_col) // 128 * 128
    cap = max(128, min(cap, _MAX_TM))
    if m <= cap:
        if batch == 1 and m > 256:
            # v7x megacore: give both TensorCores at least one grid step each.
            return _round_up(-(-m // 2), 128)
        return m                                    # full-extent block: legal for any M
    return cap


def focus_forward(x, weight, bias, *, tm=None):
    """x: (B,C,H,W) NCHW.  weight: (Cout, 4C) (squeezed 1x1 conv).  bias: (Cout,)."""
    b, c, h, w = x.shape
    assert h % 2 == 0 and w % 2 == 0, "Focus requires even spatial dims"
    h2, w2 = h // 2, w // 2
    cin4 = 4 * c
    cout = weight.shape[0]
    m = h2 * w2

    # (B, 4C, M) channels-first; strided-slice + concat + reshape is a single
    # XLA copy (no transpose, no extra pad pass).
    xu = space_to_channels(x).reshape(b, cin4, m)

    itemsize = jnp.dtype(x.dtype).itemsize
    tile_m = _pick_tile_m(m, cin4, cout, itemsize, b, tm)
    n_m = pl.cdiv(m, tile_m)

    b2d = bias.reshape(cout, 1)

    cost = pl.CostEstimate(
        flops=2 * b * m * cin4 * cout + 4 * b * m * cout,
        transcendentals=b * m * cout,
        bytes_accessed=itemsize * (b * cin4 * m + cout * cin4 + b * cout * m)
        + jnp.dtype(bias.dtype).itemsize * cout,
    )

    out2d = pl.pallas_call(
        _focus_conv_kernel,
        out_shape=jax.ShapeDtypeStruct((b, cout, m), x.dtype),
        grid_spec=pltpu.PrefetchScalarGridSpec(
            num_scalar_prefetch=0,
            grid=(b, n_m),
            in_specs=[
                pl.BlockSpec((1, cin4, tile_m), lambda bi, mi: (bi, 0, mi)),
                pl.BlockSpec((cout, cin4), lambda bi, mi: (0, 0)),
                pl.BlockSpec((cout, 1), lambda bi, mi: (0, 0)),
            ],
            out_specs=pl.BlockSpec((1, cout, tile_m), lambda bi, mi: (bi, 0, mi)),
        ),
        compiler_params=pltpu.CompilerParams(
            dimension_semantics=("parallel", "parallel"),
            vmem_limit_bytes=_VMEM_LIMIT_BYTES),
        cost_estimate=cost,
    )(xu, weight, b2d)

    return out2d.reshape(b, cout, h2, w2)                        # (B, Cout, H/2, W/2)


def reference_forward(x, weight, bias):
    """Pure-JAX reference matching the PyTorch Focus module (computed in f32)."""
    xu = space_to_channels(x).astype(jnp.float32)                # (B, 4C, H/2, W/2)
    y = jnp.einsum('bchw,oc->bohw', xu, weight.astype(jnp.float32))
    y = y + bias.astype(jnp.float32)[None, :, None, None]
    return y * jax.nn.sigmoid(y)


if __name__ == "__main__":
    key = jax.random.PRNGKey(0)
    focus_jit = jax.jit(focus_forward)

    def run_case(idx, b, c, h, w, cout, dtype, atol, rtol):
        kx, kw, kb = jax.random.split(jax.random.fold_in(key, idx), 3)
        x = jax.random.normal(kx, (b, c, h, w), dtype=jnp.float32).astype(dtype)
        weight = (jax.random.normal(kw, (cout, 4 * c), dtype=jnp.float32) * 0.1).astype(dtype)
        bias = jax.random.normal(kb, (cout,), dtype=jnp.float32) * 0.1
        out = jax.block_until_ready(focus_jit(x, weight, bias))
        ref = reference_forward(x, weight, bias)
        assert out.shape == (b, cout, h // 2, w // 2), (idx, out.shape)
        assert jnp.allclose(out.astype(jnp.float32), ref, atol=atol, rtol=rtol), \
            f"case {idx}: mismatch vs reference"

    # Small smoke test: single full-extent M block (M=64 < 128, B on the grid).
    run_case(0, 2, 4, 16, 16, 32, jnp.float32, 1e-4, 1e-4)
    # Non-128-multiple M (M=676) with B=1: exercises the megacore M split
    # (2 tiles of 384) and the ragged last M block (bounded read/write).
    run_case(1, 1, 3, 52, 52, 48, jnp.float32, 1e-4, 1e-4)
    # bf16 I/O path (f32 accumulation + SiLU epilogue stay in-kernel f32).
    run_case(2, 2, 3, 32, 32, 40, jnp.bfloat16, 3e-2, 3e-2)

    print("KERNEL_OK")
</pallas_src>

<mosaic_0001>
module attributes {stable_mosaic.version = 11 : i64} {
  func.func @_focus_conv_kernel(%arg0: i32, %arg1: i32, %arg2: memref<1x16x64xf32, #tpu.memory_space<vmem>>, %arg3: memref<32x16xf32, #tpu.memory_space<vmem>>, %arg4: memref<32x1xf32, #tpu.memory_space<vmem>>, %arg5: memref<1x32x64xf32, #tpu.memory_space<vmem>>) attributes {dimension_semantics = [#tpu.dimension_semantics<parallel>, #tpu.dimension_semantics<parallel>], iteration_bounds = array<i64: 2, 1>, scalar_prefetch = 0 : i64, scratch_operands = 0 : i64, tpu.core_type = #tpu.core_type<tc>, window_params = [{transform_indices = @transform_0, window_bounds = array<i64: 1, 16, 64>}, {pipeline_mode = #tpu.pipeline_mode<synchronous>, transform_indices = @transform_1, window_bounds = array<i64: 32, 16>}, {pipeline_mode = #tpu.pipeline_mode<synchronous>, transform_indices = @transform_2, window_bounds = array<i64: 32, 1>}, {transform_indices = @transform_3, window_bounds = array<i64: 1, 32, 64>}]} {
    %c0 = arith.constant 0 : index
    %c0_0 = arith.constant 0 : index
    %0 = vector.load %arg3[%c0, %c0_0] : memref<32x16xf32, #tpu.memory_space<vmem>>, vector<32x16xf32>
    %c0_1 = arith.constant 0 : index
    %c0_2 = arith.constant 0 : index
    %c0_3 = arith.constant 0 : index
    %1 = vector.load %arg2[%c0_1, %c0_2, %c0_3] : memref<1x16x64xf32, #tpu.memory_space<vmem>>, vector<1x16x64xf32>
    %2 = vector.shape_cast %1 : vector<1x16x64xf32> to vector<16x64xf32>
    %cst = arith.constant dense<0.000000e+00> : vector<32x64xf32>
    %3 = tpu.matmul %0, %2, %cst {dimension_numbers = #tpu.dot_dimension_numbers<[1], [0], [0], [1], [0, 0, 1, 1], [], []>} : vector<32x16xf32>, vector<16x64xf32>, vector<32x64xf32> -> vector<32x64xf32>
    %c0_4 = arith.constant 0 : index
    %c0_5 = arith.constant 0 : index
    %4 = vector.load %arg4[%c0_4, %c0_5] : memref<32x1xf32, #tpu.memory_space<vmem>>, vector<32x1xf32>
    %5 = vector.broadcast %4 : vector<32x1xf32> to vector<32x64xf32>
    %6 = arith.addf %3, %5 : vector<32x64xf32>
    %7 = arith.negf %6 : vector<32x64xf32>
    %8 = math.exp %7 : vector<32x64xf32>
    %cst_6 = arith.constant 1.000000e+00 : f32
    %9 = vector.broadcast %cst_6 : f32 to vector<32x64xf32>
    %10 = arith.addf %9, %8 : vector<32x64xf32>
    %11 = arith.divf %9, %10 : vector<32x64xf32>
    %12 = arith.mulf %6, %11 : vector<32x64xf32>
    %c0_7 = arith.constant 0 : index
    %c0_8 = arith.constant 0 : index
    %c0_9 = arith.constant 0 : index
    %13 = vector.load %arg5[%c0_7, %c0_8, %c0_9] : memref<1x32x64xf32, #tpu.memory_space<vmem>>, vector<1x32x64xf32>
    %14 = vector.shape_cast %13 : vector<1x32x64xf32> to vector<32x64xf32>
    %15 = vector.shape_cast %12 : vector<32x64xf32> to vector<1x32x64xf32>
    tpu.vector_store %arg5[%c0_7, %c0_8, %c0_9], %15 {strides = array<i32>} : memref<1x32x64xf32, #tpu.memory_space<vmem>>, vector<1x32x64xf32>,
    return
  }
  func.func @transform_0(%arg0: i32, %arg1: i32) -> (i32, i32, i32) {
    %c0_i32 = arith.constant 0 : i32
    %c0_i32_0 = arith.constant 0 : i32
    return %arg0, %c0_i32, %arg1 : i32, i32, i32
  }
  func.func @transform_1(%arg0: i32, %arg1: i32) -> (i32, i32) {
    %c0_i32 = arith.constant 0 : i32
    %c0_i32_0 = arith.constant 0 : i32
    %c0_i32_1 = arith.constant 0 : i32
    return %c0_i32, %c0_i32_0 : i32, i32
  }
  func.func @transform_2(%arg0: i32, %arg1: i32) -> (i32, i32) {
    %c0_i32 = arith.constant 0 : i32
    %c0_i32_0 = arith.constant 0 : i32
    %c0_i32_1 = arith.constant 0 : i32
    return %c0_i32, %c0_i32_0 : i32, i32
  }
  func.func @transform_3(%arg0: i32, %arg1: i32) -> (i32, i32, i32) {
    %c0_i32 = arith.constant 0 : i32
    %c0_i32_0 = arith.constant 0 : i32
    return %arg0, %c0_i32, %arg1 : i32, i32, i32
  }
}

</mosaic_0001>

<llo_original>
// kernel: focus_forward.1
$region0: #{focus_forward.1}
  #allocation0 [shape = 'u32[]', space=smem, size = 0x4, offset = 0x4, fixed_abs, tag = 'smem constant byte address 0x4 - core index']
  #allocation1 [shape = 'u32[144,128]{1,0:T(1,128)}', space=vmem, size = 0x12000, scoped, tag = 'internal scratch']
  %s0 = inlined_call_operand.vmem [shape: f32[2,16,64], index: 0, kind: input, shape index: {}]
  %s1 = inlined_call_operand.vmem [shape: f32[32,16], index: 1, kind: input, shape index: {}]
  %s2 = inlined_call_operand.vmem [shape: f32[32,1], index: 2, kind: input, shape index: {}]
  %s3 = inlined_call_operand.vmem [shape: f32[2,32,64], index: 3, kind: output, shape index: {}]
  %s4 = sld [smem:[#allocation0]]
  $region45: #{focus_forward.1} parent=0
    _
  %s6 = ssub.s32 1, %s4
  %s7 = scalar_select 0, %s6, %s4
  loop: start=0, step=1, limit=4
  $region2: #{focus_forward.1} parent=0 // loop_pre_header
    _
  $region3: #{focus_forward.1} parent=0 // loop_header
    %s9 = sphi 0, %s13
    %p10 = scmp.ge.s32.totalorder %s9, 4
    %s16 = sphi 0, %s28
    %s17 = sphi 0, %s24
    %s18 = sphi 0, %s16
    %s19 = sphi 0, %s17
    %s20 = sphi 0, %s18
    %s21 = sphi 0, %s19
    %s33 = sphi 0, %s35
    %s36 = sphi 0, %s33
    %s37 = sphi 0, %s36
    %s53 = sphi 0, %s37
    %s57 = sphi 0, %s57
    %s59 = sphi 0, %s57
    %s60 = sphi 0, %s59
    %s74 = sphi 0, %s60
    %s78 = sphi 0, %s78
    %s80 = sphi 0, %s78
    %s81 = sphi 0, %s80
    %s95 = sphi 0, %s81
    %s103 = sphi 0, %s105
    %s106 = sphi 0, %s103
    %s107 = sphi 0, %s106
    %s123 = sphi 0, %s107
  $region4: #{focus_forward.1} parent=0 // loop_header_branch
    %12 = sbr.rel (%p10) target = $region8
  $region5: #{focus_forward.1} parent=0 // loop_body
    %s14 = ssub.s32 %s9, 1
    %s15 = ssub.s32 %s9, 2
    %s22 = sadd.s32 1, %s17
    %p23 = scmp.ge.s32.totalorder %s22, 1
    %s24 = scalar_select %p23, 0, %s22
    %s25 = sadd.s32 1, %s16
    %s26 = scalar_select %p23, %s25, %s16
    %p27 = scmp.ge.s32.totalorder %s26, 2
    %s28 = scalar_select %p27, 0, %s26
    %s29 = ssub.s32 %s16, %s28
    %s30 = ssub.s32 %s17, %s24
    %s31 = sor.u32 %s29, %s30
    %p32 = scmp.eq.s32.totalorder %s31, 0
    %s34 = sadd.s32 %s33, 1
    %s35 = scalar_select %p32, %s33, %s34
    %p38 = pneg %p32
    %p39 = scmp.eq.s32.totalorder %s9, 1
    %p40 = por %p38, %p39
    %p41 = scmp.ne.s32.totalorder %s33, %s36
    %p42 = scmp.eq.s32.totalorder %s9, 0
    %p43 = por %p41, %p42
    %p44 = scmp.ne.s32.totalorder %s33, %s36
    %p45 = scmp.eq.s32.totalorder %s14, 1
    %p46 = por %p44, %p45
    %p47 = scmp.ne.s32.totalorder %s36, %s37
    %p48 = scmp.eq.s32.totalorder %s14, 0
    %p49 = por %p47, %p48
    %p50 = scmp.ne.s32.totalorder %s36, %s37
    %p51 = scmp.eq.s32.totalorder %s15, 1
    %p52 = por %p50, %p51
    %p54 = scmp.ne.s32.totalorder %s37, %s53
    %p55 = scmp.eq.s32.totalorder %s15, 0
    %p56 = por %p54, %p55
    %s58 = sadd.s32 %s57, 1
    %p61 = scmp.eq.s32.totalorder %s9, 1
    %p62 = scmp.ne.s32.totalorder %s57, %s59
    %p63 = scmp.eq.s32.totalorder %s9, 0
    %p64 = por %p62, %p63
    %p65 = scmp.ne.s32.totalorder %s57, %s59
    %p66 = scmp.eq.s32.totalorder %s14, 1
    %p67 = por %p65, %p66
    %p68 = scmp.ne.s32.totalorder %s59, %s60
    %p69 = scmp.eq.s32.totalorder %s14, 0
    %p70 = por %p68, %p69
    %p71 = scmp.ne.s32.totalorder %s59, %s60
    %p72 = scmp.eq.s32.totalorder %s15, 1
    %p73 = por %p71, %p72
    %p75 = scmp.ne.s32.totalorder %s60, %s74
    %p76 = scmp.eq.s32.totalorder %s15, 0
    %p77 = por %p75, %p76
    %s79 = sadd.s32 %s78, 1
    %p82 = scmp.eq.s32.totalorder %s9, 1
    %p83 = scmp.ne.s32.totalorder %s78, %s80
    %p84 = scmp.eq.s32.totalorder %s9, 0
    %p85 = por %p83, %p84
    %p86 = scmp.ne.s32.totalorder %s78, %s80
    %p87 = scmp.eq.s32.totalorder %s14, 1
    %p88 = por %p86, %p87
    %p89 = scmp.ne.s32.totalorder %s80, %s81
    %p90 = scmp.eq.s32.totalorder %s14, 0
    %p91 = por %p89, %p90
    %p92 = scmp.ne.s32.totalorder %s80, %s81
    %p93 = scmp.eq.s32.totalorder %s15, 1
    %p94 = por %p92, %p93
    %p96 = scmp.ne.s32.totalorder %s81, %s95
    %p97 = scmp.eq.s32.totalorder %s15, 0
    %p98 = por %p96, %p97
    %s99 = ssub.s32 %s16, %s28
    %s100 = ssub.s32 %s17, %s24
    %s101 = sor.u32 %s99, %s100
    %p102 = scmp.eq.s32.totalorder %s101, 0
    %s104 = sadd.s32 %s103, 1
    %s105 = scalar_select %p102, %s103, %s104
    %p108 = pneg %p102
    %p109 = scmp.eq.s32.totalorder %s9, 1
    %p110 = por %p108, %p109
    %p111 = scmp.ne.s32.totalorder %s103, %s106
    %p112 = scmp.eq.s32.totalorder %s9, 0
    %p113 = por %p111, %p112
    %p114 = scmp.ne.s32.totalorder %s103, %s106
    %p115 = scmp.eq.s32.totalorder %s14, 1
    %p116 = por %p114, %p115
    %p117 = scmp.ne.s32.totalorder %s106, %s107
    %p118 = scmp.eq.s32.totalorder %s14, 0
    %p119 = por %p117, %p118
    %p120 = scmp.ne.s32.totalorder %s106, %s107
    %p121 = scmp.eq.s32.totalorder %s15, 1
    %p122 = por %p120, %p121
    %p124 = scmp.ne.s32.totalorder %s107, %s123
    %p125 = scmp.eq.s32.totalorder %s15, 0
    %p126 = por %p124, %p125
    %p127 = scmp.le.s32.totalorder 1, %s9
    %p128 = scmp.lt.s32.totalorder %s9, 3
    %p129 = pnand %p127, %p128
    %p130 = pneg %p129
    // Predicated region
    $region9: #{focus_forward.1} parent=5 // pred_check
      _
    $region10: #{focus_forward.1} parent=5 // pred_check_branch
      %132 = sbr.rel (%p129) target = $region12
    $region11: #{focus_forward.1} parent=5 // pred_region
      %s133 = ssub.s32 %s9, 1
      // Predicated region
      $region13: #{focus_forward.1} parent=11 // pred_check
        %p134 = pneg %p70
      $region14: #{focus_forward.1} parent=11 // pred_check_branch
        %136 = sbr.rel (%p134) target = $region16
      $region15: #{focus_forward.1} parent=11 // pred_region
        _
      $region16: #{focus_forward.1} parent=11 // pred_fallthru
        _
      // Predicated region
      $region17: #{focus_forward.1} parent=11 // pred_check
        %p137 = pneg %p91
      $region18: #{focus_forward.1} parent=11 // pred_check_branch
        %139 = sbr.rel (%p137) target = $region20
      $region19: #{focus_forward.1} parent=11 // pred_region
        _
      $region20: #{focus_forward.1} parent=11 // pred_fallthru
        _
    $region12: #{focus_forward.1} parent=5 // pred_fallthru
      _
    %p140 = scmp.lt.s32.totalorder %s9, 2
    // Predicated region
    $region21: #{focus_forward.1} parent=5 // pred_check
      %p141 = pneg %p140
    $region22: #{focus_forward.1} parent=5 // pred_check_branch
      %143 = sbr.rel (%p141) target = $region24
    $region23: #{focus_forward.1} parent=5 // pred_region
      // Predicated region
      $region25: #{focus_forward.1} parent=23 // pred_check
        %p144 = pneg %p43
      $region26: #{focus_forward.1} parent=23 // pred_check_branch
        %146 = sbr.rel (%p144) target = $region28
      $region27: #{focus_forward.1} parent=23 // pred_region
        %p147 = scmp.lt.s32.totalorder %s16, 1
        %s148 = scalar_select %p147, %s16, 1
        %p149 = scmp.lt.s32.totalorder %s17, 0
        %s150 = scalar_select %p149, %s17, 0
        %s151 = smul.addr %s148, 2
        %s152 = sadd.s32 %s150, %s151
        %s153 = smul.addr %s152, 8
        %s154 = scalar_lea.vmem %s0, %s153
      $region28: #{focus_forward.1} parent=23 // pred_fallthru
        _
    $region24: #{focus_forward.1} parent=5 // pred_fallthru
      _
    %p155 = scmp.le.s32.totalorder 1, %s9
    %p156 = scmp.lt.s32.totalorder %s9, 3
    %p157 = pnand %p155, %p156
    %p158 = pneg %p157
    // Predicated region
    $region29: #{focus_forward.1} parent=5 // pred_check
      _
    $region30: #{focus_forward.1} parent=5 // pred_check_branch
      %160 = sbr.rel (%p157) target = $region32
    $region31: #{focus_forward.1} parent=5 // pred_region
      %s161 = ssub.s32 %s9, 1
      %p162 = scmp.lt.s32.totalorder %s18, 1
      %s163 = scalar_select %p162, %s18, 1
      %p164 = scmp.lt.s32.totalorder %s19, 0
      %s165 = scalar_select %p164, %s19, 0
      %s166 = smul.addr %s163, 2
      %s167 = sadd.s32 %s165, %s166
      %s168 = smul.addr %s167, 8
      %s169 = scalar_lea.vmem %s0, %s168
      %p170 = pneg %p49
      %p171 = pneg %p46
      %p172 = pneg %p70
      %p173 = pneg %p67
      %p174 = pneg %p91
      %p175 = pneg %p88
      %p176 = pneg %p119
      %p177 = pneg %p116
      %p178 = scmp.lt.s32.totalorder %s18, 1
      %s179 = scalar_select %p178, %s18, 1
      %p180 = scmp.lt.s32.totalorder %s19, 0
      %s181 = scalar_select %p180, %s19, 0
      %s182 = smul.addr %s179, 4
      %s183 = sadd.s32 %s181, %s182
      %s184 = smul.addr %s183, 8
      %s185 = scalar_lea.vmem %s3, %s184
      %p186 = scmp.lt.s32.totalorder %s18, 1
      %s187 = scalar_select %p186, %s18, 1
      %p188 = scmp.lt.s32.totalorder %s19, 0
      %s189 = scalar_select %p188, %s19, 0
      %s190 = smul.addr %s187, 2
      %s191 = sadd.s32 %s189, %s190
      %s192 = smul.addr %s191, 8
      %s193 = scalar_lea.vmem %s0, %s192
      %p194 = scmp.lt.s32.totalorder %s18, 1
      %s195 = scalar_select %p194, %s18, 1
      %p196 = scmp.lt.s32.totalorder %s19, 0
      %s197 = scalar_select %p196, %s19, 0
      %s198 = smul.addr %s195, 4
      %s199 = sadd.s32 %s197, %s198
      %s200 = smul.addr %s199, 8
      %s201 = scalar_lea.vmem %s3, %s200
      %v202 = vld [vmem:[%s1] sm:$0xff]
      %v203 = vld [vmem:[%s1 + $0x8] sm:$0xff]
      %v204 = vld [vmem:[%s1 + $0x10] sm:$0xff]
      %v205 = vld [vmem:[%s1 + $0x18] sm:$0xff]
      %v206 = vld [vmem:[%s193] sm:$0xff]
      %v207 = vld [vmem:[%s193 + $0x8] sm:$0xff]
      %v208 = vld [vmem:[%s2] sm:$0xff]
      %v209 = vld [vmem:[%s2 + $0x8] sm:$0xff]
      %v210 = vld [vmem:[%s2 + $0x10] sm:$0xff]
      %v211 = vld [vmem:[%s2 + $0x18] sm:$0xff]
      %213 = vset.pattern.permute.xlu0 0
      %214 = vperm.xlu0 %213, %v208
      %v215 = vpop.permute.xlu0 %214
      %218 = vset.pattern.permute.xlu0 0
      %219 = vperm.xlu0 %218, %v209
      %v220 = vpop.permute.xlu0 %219
      %223 = vset.pattern.permute.xlu0 0
      %224 = vperm.xlu0 %223, %v210
      %v225 = vpop.permute.xlu0 %224
      %228 = vset.pattern.permute.xlu0 0
      %229 = vperm.xlu0 %228, %v211
      %v230 = vpop.permute.xlu0 %229
      %vm232 = vcmask 130048
      %v234 = vsel %vm232, %v202, 0
      %v237 = vsel %vm232, %v203, 0
      %v240 = vsel %vm232, %v204, 0
      %v243 = vsel %vm232, %v205, 0
      %245 = vmatprep.subr.mxu0 0.0
      %246 = vmatpush1.msra.mxu0 %v206
      %247 = vmatprep.subr.mxu0 0.0
      %248 = vmatpush1.msra.mxu0 %v207
      %249 = vmatprep.subr.mxu0 0.0
      %250 = vmatpush1.msra.mxu0 0.0
      %251 = vmatprep.subr.mxu0 0.0
      %252 = vmatpush1.msra.mxu0 0.0
      %253 = vmatprep.subr.mxu0 0.0
      %254 = vmatpush1.msra.mxu0 0.0
      %255 = vmatprep.subr.mxu0 0.0
      %256 = vmatpush1.msra.mxu0 0.0
      %257 = vmatprep.subr.mxu0 0.0
      %258 = vmatpush1.msra.mxu0 0.0
      %259 = vmatprep.subr.mxu0 0.0
      %260 = vmatpush1.msra.mxu0 0.0
      %261 = vmatprep.subr.mxu0 0.0
      %262 = vmatpush1.msra.mxu0 0.0
      %263 = vmatprep.subr.mxu0 0.0
      %264 = vmatpush1.msra.mxu0 0.0
      %265 = vmatprep.subr.mxu0 0.0
      %266 = vmatpush1.msra.mxu0 0.0
      %267 = vmatprep.subr.mxu0 0.0
      %268 = vmatpush1.msra.mxu0 0.0
      %269 = vmatprep.subr.mxu0 0.0
      %270 = vmatpush1.msra.mxu0 0.0
      %271 = vmatprep.subr.mxu0 0.0
      %272 = vmatpush1.msra.mxu0 0.0
      %273 = vmatprep.subr.mxu0 0.0
      %274 = vmatpush1.msra.mxu0 0.0
      %275 = vmatprep.subr.mxu0 0.0
      %276 = vmatpush1.msra.mxu0 0.0
      %277 = vmatprep.subr.mxu0 0.0
      %278 = vmatpush1.msra.mxu0 0.0
      %279 = vmatprep.subr.mxu0 0.0
      %280 = vmatpush1.msra.mxu0 0.0
      %281 = vmatprep.subr.mxu0 0.0
      %282 = vmatpush1.msra.mxu0 0.0
      %283 = vmatprep.subr.mxu0 0.0
      %284 = vmatpush1.msra.mxu0 0.0
      %285 = vmatprep.subr.mxu0 0.0
      %286 = vmatpush1.msra.mxu0 0.0
      %287 = vmatprep.subr.mxu0 0.0
      %288 = vmatpush1.msra.mxu0 0.0
      %289 = vmatprep.subr.mxu0 0.0
      %290 = vmatpush1.msra.mxu0 0.0
      %291 = vmatprep.subr.mxu0 0.0
      %292 = vmatpush1.msra.mxu0 0.0
      %293 = vmatprep.subr.mxu0 0.0
      %294 = vmatpush1.msra.mxu0 0.0
      %295 = vmatprep.subr.mxu0 0.0
      %296 = vmatpush1.msra.mxu0 0.0
      %297 = vmatprep.subr.mxu0 0.0
      %298 = vmatpush1.msra.mxu0 0.0
      %299 = vmatprep.subr.mxu0 0.0
      %300 = vmatpush1.msra.mxu0 0.0
      %301 = vmatprep.subr.mxu0 0.0
      %302 = vmatpush1.msra.mxu0 0.0
      %303 = vmatprep.subr.mxu0 0.0
      %304 = vmatpush1.msra.mxu0 0.0
      %305 = vmatprep.subr.mxu0 0.0
      %306 = vmatpush1.msra.mxu0 0.0
      %307 = vmatprep.subr.mxu0 0.0
      %308 = vmatpush1.msra.mxu0 0.0
      %309 = vmatprep.mubr.f32.mxu0 0.0
      %310 = vmatmul.mubr.f32.gmra.mrb[0].mxu0 %v234
      %v311 = vpop.f32.mrb[0].mxu0
      %v312 = vadd.f32 %v215, %v311
      %v313 = vpop.f32.mrb[0].mxu0
      %314 = vmatprep.mubr.f32.mxu0 0.0
      %315 = vmatmul.mubr.f32.gmra.mrb[0].mxu0 %v237
      %v316 = vpop.f32.mrb[0].mxu0
      %v317 = vadd.f32 %v220, %v316
      %v318 = vpop.f32.mrb[0].mxu0
      %319 = vmatprep.mubr.f32.mxu0 0.0
      %320 = vmatmul.mubr.f32.gmra.mrb[0].mxu0 %v240
      %v321 = vpop.f32.mrb[0].mxu0
      %v322 = vadd.f32 %v225, %v321
      %v323 = vpop.f32.mrb[0].mxu0
      %324 = vmatprep.mubr.f32.mxu0 0.0
      %325 = vmatmul.mubr.f32.gmra.mrb[0].mxu0 %v243
      %v326 = vpop.f32.mrb[0].mxu0
      %v327 = vadd.f32 %v230, %v326
      %v328 = vpop.f32.mrb[0].mxu0
      %329 = vdwg.mxu0
      %v330 = vxor.u32 %v312, 2147483648
      %v331 = vxor.u32 %v317, 2147483648
      %v332 = vxor.u32 %v322, 2147483648
      %v333 = vxor.u32 %v327, 2147483648
      %v334 = vmul.f32 %v330, 1.442695
      %v335 = vpow.pop %v334
      %v336 = vmul.f32 %v331, 1.442695
      %v337 = vpow.pop %v336
      %v338 = vmul.f32 %v332, 1.442695
      %v339 = vpow.pop %v338
      %v340 = vmul.f32 %v333, 1.442695
      %v341 = vpow.pop %v340
      %v342 = vadd.f32 %v335, 1.0
      %v343 = vadd.f32 %v337, 1.0
      %v344 = vadd.f32 %v339, 1.0
      %v345 = vadd.f32 %v341, 1.0
      %v346 = vrcp.pop %v342
      %v347 = vmul.f32 1.0, %v346
      %v348 = vrcp.pop %v343
      %v349 = vmul.f32 1.0, %v348
      %v350 = vrcp.pop %v344
      %v351 = vmul.f32 1.0, %v350
      %v352 = vrcp.pop %v345
      %v353 = vmul.f32 1.0, %v352
      %v354 = vmul.f32 %v312, %v347
      %v355 = vmul.f32 %v317, %v349
      %v356 = vmul.f32 %v322, %v351
      %v357 = vmul.f32 %v327, %v353
      %vm358 = vcmask 523264
      %359 = vst.msk [vmem:[%s201] sm:$0xff] %vm358, %v354
      %360 = vst.msk [vmem:[%s201 + $0x8] sm:$0xff] %vm358, %v355
      %361 = vst.msk [vmem:[%s201 + $0x10] sm:$0xff] %vm358, %v356
      %362 = vst.msk [vmem:[%s201 + $0x18] sm:$0xff] %vm358, %v357
      %p363 = scmp.lt.s32.totalorder %s18, 1
      %s364 = scalar_select %p363, %s18, 1
      %p365 = scmp.lt.s32.totalorder %s19, 0
      %s366 = scalar_select %p365, %s19, 0
      %s367 = smul.addr %s364, 4
      %s368 = sadd.s32 %s366, %s367
      %s369 = smul.addr %s368, 8
      %s370 = scalar_lea.vmem %s3, %s369
      // Predicated region
      $region33: #{focus_forward.1} parent=31 // pred_check
        %p371 = pneg %p116
      $region34: #{focus_forward.1} parent=31 // pred_check_branch
        %373 = sbr.rel (%p371) target = $region36
      $region35: #{focus_forward.1} parent=31 // pred_region
        _
      $region36: #{focus_forward.1} parent=31 // pred_fallthru
        _
    $region32: #{focus_forward.1} parent=5 // pred_fallthru
      _
    %p374 = scmp.le.s32.totalorder 2, %s9
    // Predicated region
    $region37: #{focus_forward.1} parent=5 // pred_check
      %p375 = pneg %p374
    $region38: #{focus_forward.1} parent=5 // pred_check_branch
      %377 = sbr.rel (%p375) target = $region40
    $region39: #{focus_forward.1} parent=5 // pred_region
      %s378 = ssub.s32 %s9, 2
      // Predicated region
      $region41: #{focus_forward.1} parent=39 // pred_check
        %p379 = pneg %p122
      $region42: #{focus_forward.1} parent=39 // pred_check_branch
        %381 = sbr.rel (%p379) target = $region44
      $region43: #{focus_forward.1} parent=39 // pred_region
        %p382 = scmp.lt.s32.totalorder %s20, 1
        %s383 = scalar_select %p382, %s20, 1
        %p384 = scmp.lt.s32.totalorder %s21, 0
        %s385 = scalar_select %p384, %s21, 0
        %s386 = smul.addr %s383, 4
        %s387 = sadd.s32 %s385, %s386
        %s388 = smul.addr %s387, 8
        %s389 = scalar_lea.vmem %s3, %s388
      $region44: #{focus_forward.1} parent=39 // pred_fallthru
        _
    $region40: #{focus_forward.1} parent=5 // pred_fallthru
      _
  $region6: #{focus_forward.1} parent=0 // loop_footer
    %s13 = sadd.s32 1, %s9
  $region7: #{focus_forward.1} parent=0 // loop_footer_branch
    %8 = sbr.rel target = $region3
  $region8: #{focus_forward.1} parent=0 // loop_exit
    _

</llo_original>
